<compile_context>
chip_gen: v6e
topology: v6e:2x2x1
jax: 0.10.0
libtpu: 0.0.40
codegen_flags: <defaults>
</compile_context>

<pallas_src>
import jax
import jax.numpy as jnp
from jax.experimental import pallas as pl
from jax.experimental.pallas import tpu as pltpu

INPUT_SIZE = 2
HIDDEN_SIZE = 50
OUTPUT_SIZE = 1

LANE = 128           # lane padding for the hidden dimension
SUB = 8              # sublane granularity for the batch dimension
DEFAULT_TILE_B = 1024  # batch rows per grid step (f32 h1/h2 tiles ~512 KiB each)


def _round_up(n, m):
    return ((n + m - 1) // m) * m


def _mlp_kernel(x_ref, w1_ref, b1_ref, w2_ref, b2_ref, w3_ref, b3_ref, o_ref):
    x = x_ref[...]                                           # (TILE_B, 2) f32

    # Layer 1 (K = 2): two VPU broadcast-FMAs instead of a 128-wide padded
    # matmul; avoids inflating the dominant HBM read stream.
    h1 = jnp.tanh(
        x[:, 0:1] * w1_ref[0:1, :]
        + x[:, 1:2] * w1_ref[1:2, :]
        + b1_ref[...]
    )                                                        # (TILE_B, 128) f32

    # Layer 2 (50x50 padded to 128x128): single bf16 MXU matmul, f32 accumulate,
    # bias-add / tanh in f32. Padded hidden lanes stay exactly zero.
    h2 = jnp.tanh(
        jnp.dot(h1.astype(jnp.bfloat16), w2_ref[...],
                preferred_element_type=jnp.float32)
        + b2_ref[...]
    )                                                        # (TILE_B, 128) f32

    # Layer 3 (N = 1): lane-wise multiply + cross-lane reduce (XLU slot, free
    # alongside MXU/VPU) -> write only the single meaningful output lane.
    pre = jnp.sum(h2 * w3_ref[...], axis=-1, keepdims=True) + b3_ref[...]
    o_ref[...] = jnp.tanh(pre)                               # (TILE_B, 1) f32


def prepare_params(w1, b1, w2, b2, w3, b3):
    """Pad / cast parameters once (outside the per-call forward path).

    Weights are stored [in_features, out_features] (transpose of PyTorch's
    nn.Linear.weight). Zero padding is semantics-preserving: padded hidden
    columns are tanh(0 + 0) = 0 and then meet zero weight rows / lanes.
    """
    w1p = jnp.zeros((SUB, LANE), jnp.float32).at[:INPUT_SIZE, :HIDDEN_SIZE].set(
        jnp.asarray(w1, jnp.float32))
    b1p = jnp.zeros((1, LANE), jnp.float32).at[0, :HIDDEN_SIZE].set(
        jnp.asarray(b1, jnp.float32))
    w2p = jnp.zeros((LANE, LANE), jnp.float32).at[:HIDDEN_SIZE, :HIDDEN_SIZE].set(
        jnp.asarray(w2, jnp.float32)).astype(jnp.bfloat16)   # bf16 for the MXU
    b2p = jnp.zeros((1, LANE), jnp.float32).at[0, :HIDDEN_SIZE].set(
        jnp.asarray(b2, jnp.float32))
    # Layer-3 weight as a (1, 128) row over hidden lanes (reduce formulation).
    w3p = jnp.zeros((1, LANE), jnp.float32).at[0, :HIDDEN_SIZE].set(
        jnp.asarray(w3, jnp.float32)[:, 0])
    b3p = jnp.asarray(b3, jnp.float32).reshape(1, 1)
    return w1p, b1p, w2p, b2p, w3p, b3p


@jax.jit
def simple_dfa_forward(x, w1p, b1p, w2p, b2p, w3p, b3p):
    """x: [B, INPUT_SIZE] float32. Returns [B, OUTPUT_SIZE] float32."""
    B = x.shape[0]
    # Full-batch tile for small batches, 1024-row tiles (pipelined) otherwise.
    tile_b = min(DEFAULT_TILE_B, _round_up(B, SUB))
    Bp = _round_up(B, tile_b)

    xp = x.astype(jnp.float32)
    if Bp != B:
        xp = jnp.pad(xp, ((0, Bp - B), (0, 0)))  # padded batch rows sliced away

    out = pl.pallas_call(
        _mlp_kernel,
        out_shape=jax.ShapeDtypeStruct((Bp, OUTPUT_SIZE), jnp.float32),
        grid=(Bp // tile_b,),
        in_specs=[
            pl.BlockSpec((tile_b, INPUT_SIZE), lambda i: (i, 0)),  # x (streamed)
            pl.BlockSpec((SUB, LANE), lambda i: (0, 0)),           # w1 (resident)
            pl.BlockSpec((1, LANE), lambda i: (0, 0)),             # b1
            pl.BlockSpec((LANE, LANE), lambda i: (0, 0)),          # w2 (bf16)
            pl.BlockSpec((1, LANE), lambda i: (0, 0)),             # b2
            pl.BlockSpec((1, LANE), lambda i: (0, 0)),             # w3 row
            pl.BlockSpec((1, 1), lambda i: (0, 0)),                # b3
        ],
        out_specs=pl.BlockSpec((tile_b, OUTPUT_SIZE), lambda i: (i, 0)),
        compiler_params=pltpu.CompilerParams(
            dimension_semantics=("parallel",),       # megacore on v7x
            vmem_limit_bytes=32 * 1024 * 1024,       # portable across v5e/v6e/v7x
        ),
    )(xp, w1p, b1p, w2p, b2p, w3p, b3p)

    return out[:B]


def _xavier_uniform(key, fan_in, fan_out):
    bound = jnp.sqrt(6.0 / (fan_in + fan_out))
    return jax.random.uniform(
        key, (fan_in, fan_out), minval=-bound, maxval=bound, dtype=jnp.float32
    )


def init_params(key):
    k1, k2, k3, k4, k5, k6 = jax.random.split(key, 6)
    # Weights stored as [in, out] (transpose of PyTorch nn.Linear.weight).
    w1 = _xavier_uniform(k1, INPUT_SIZE, HIDDEN_SIZE)
    w2 = _xavier_uniform(k2, HIDDEN_SIZE, HIDDEN_SIZE)
    w3 = _xavier_uniform(k3, HIDDEN_SIZE, OUTPUT_SIZE)
    b1 = jax.random.uniform(k4, (HIDDEN_SIZE,), minval=-1.0, maxval=1.0,
                            dtype=jnp.float32) / jnp.sqrt(float(INPUT_SIZE))
    b2 = jax.random.uniform(k5, (HIDDEN_SIZE,), minval=-1.0, maxval=1.0,
                            dtype=jnp.float32) / jnp.sqrt(float(HIDDEN_SIZE))
    b3 = jax.random.uniform(k6, (OUTPUT_SIZE,), minval=-1.0, maxval=1.0,
                            dtype=jnp.float32) / jnp.sqrt(float(HIDDEN_SIZE))
    return w1, b1, w2, b2, w3, b3


def reference_forward(x, w1, b1, w2, b2, w3, b3):
    h1 = jnp.tanh(x @ w1 + b1)
    h2 = jnp.tanh(h1 @ w2 + b2)
    return jnp.tanh(h2 @ w3 + b3)


if __name__ == "__main__":
    key = jax.random.PRNGKey(0)
    kx, kp = jax.random.split(key)

    batch = 8
    x = jax.random.normal(kx, (batch, INPUT_SIZE), dtype=jnp.float32)
    params = init_params(kp)
    padded_params = prepare_params(*params)   # pad/cast once, not per call

    out = jax.block_until_ready(simple_dfa_forward(x, *padded_params))
    ref = reference_forward(x, *params)

    assert out.shape == (batch, OUTPUT_SIZE), out.shape
    # Layer-2 matmul runs in bf16 on the MXU -> loosen tolerance vs f32 reference.
    assert jnp.allclose(out, ref, atol=5e-2, rtol=0.0), float(
        jnp.max(jnp.abs(out - ref)))
    print("KERNEL_OK")
</pallas_src>

<mosaic_0001>
module attributes {stable_mosaic.version = 11 : i64} {
  func.func @_mlp_kernel(%arg0: i32, %arg1: memref<8x2xf32, #tpu.memory_space<vmem>>, %arg2: memref<8x128xf32, #tpu.memory_space<vmem>>, %arg3: memref<1x128xf32, #tpu.memory_space<vmem>>, %arg4: memref<128x128xbf16, #tpu.memory_space<vmem>>, %arg5: memref<1x128xf32, #tpu.memory_space<vmem>>, %arg6: memref<1x128xf32, #tpu.memory_space<vmem>>, %arg7: memref<1x1xf32, #tpu.memory_space<vmem>>, %arg8: memref<8x1xf32, #tpu.memory_space<vmem>>) attributes {dimension_semantics = [#tpu.dimension_semantics<parallel>], iteration_bounds = array<i64: 1>, scalar_prefetch = 0 : i64, scratch_operands = 0 : i64, tpu.core_type = #tpu.core_type<tc>, window_params = [{transform_indices = @transform_0, window_bounds = array<i64: 8, 2>}, {pipeline_mode = #tpu.pipeline_mode<synchronous>, transform_indices = @transform_1, window_bounds = array<i64: 8, 128>}, {pipeline_mode = #tpu.pipeline_mode<synchronous>, transform_indices = @transform_2, window_bounds = array<i64: 1, 128>}, {pipeline_mode = #tpu.pipeline_mode<synchronous>, transform_indices = @transform_3, window_bounds = array<i64: 128, 128>}, {pipeline_mode = #tpu.pipeline_mode<synchronous>, transform_indices = @transform_4, window_bounds = array<i64: 1, 128>}, {pipeline_mode = #tpu.pipeline_mode<synchronous>, transform_indices = @transform_5, window_bounds = array<i64: 1, 128>}, {pipeline_mode = #tpu.pipeline_mode<synchronous>, transform_indices = @transform_6, window_bounds = array<i64: 1, 1>}, {transform_indices = @transform_7, window_bounds = array<i64: 8, 1>}]} {
    %c0 = arith.constant 0 : index
    %c0_0 = arith.constant 0 : index
    %0 = vector.load %arg1[%c0, %c0_0] : memref<8x2xf32, #tpu.memory_space<vmem>>, vector<8x2xf32>
    %1 = vector.extract_strided_slice %0 {offsets = [0, 0], sizes = [8, 1], strides = [1, 1]} : vector<8x2xf32> to vector<8x1xf32>
    %c0_1 = arith.constant 0 : index
    %c0_2 = arith.constant 0 : index
    %2 = vector.load %arg2[%c0_1, %c0_2] : memref<8x128xf32, #tpu.memory_space<vmem>>, vector<1x128xf32>
    %3 = vector.broadcast %1 : vector<8x1xf32> to vector<8x128xf32>
    %4 = vector.broadcast %2 : vector<1x128xf32> to vector<8x128xf32>
    %5 = arith.mulf %3, %4 : vector<8x128xf32>
    %6 = vector.extract_strided_slice %0 {offsets = [0, 1], sizes = [8, 1], strides = [1, 1]} : vector<8x2xf32> to vector<8x1xf32>
    %c1 = arith.constant 1 : index
    %c0_3 = arith.constant 0 : index
    %7 = vector.load %arg2[%c1, %c0_3] : memref<8x128xf32, #tpu.memory_space<vmem>>, vector<1x128xf32>
    %8 = vector.broadcast %6 : vector<8x1xf32> to vector<8x128xf32>
    %9 = vector.broadcast %7 : vector<1x128xf32> to vector<8x128xf32>
    %10 = arith.mulf %8, %9 : vector<8x128xf32>
    %11 = arith.addf %5, %10 : vector<8x128xf32>
    %c0_4 = arith.constant 0 : index
    %c0_5 = arith.constant 0 : index
    %12 = vector.load %arg3[%c0_4, %c0_5] : memref<1x128xf32, #tpu.memory_space<vmem>>, vector<1x128xf32>
    %13 = vector.broadcast %12 : vector<1x128xf32> to vector<8x128xf32>
    %14 = arith.addf %11, %13 : vector<8x128xf32>
    %15 = math.tanh %14 : vector<8x128xf32>
    %16 = arith.truncf %15 : vector<8x128xf32> to vector<8x128xbf16>
    %c0_6 = arith.constant 0 : index
    %c0_7 = arith.constant 0 : index
    %17 = vector.load %arg4[%c0_6, %c0_7] : memref<128x128xbf16, #tpu.memory_space<vmem>>, vector<128x128xbf16>
    %cst = arith.constant dense<0.000000e+00> : vector<8x128xf32>
    %18 = tpu.matmul %16, %17, %cst {dimension_numbers = #tpu.dot_dimension_numbers<[1], [0], [0], [1], [0, 0, 1, 1], [], []>} : vector<8x128xbf16>, vector<128x128xbf16>, vector<8x128xf32> -> vector<8x128xf32>
    %c0_8 = arith.constant 0 : index
    %c0_9 = arith.constant 0 : index
    %19 = vector.load %arg5[%c0_8, %c0_9] : memref<1x128xf32, #tpu.memory_space<vmem>>, vector<1x128xf32>
    %20 = vector.broadcast %19 : vector<1x128xf32> to vector<8x128xf32>
    %21 = arith.addf %18, %20 : vector<8x128xf32>
    %22 = math.tanh %21 : vector<8x128xf32>
    %c0_10 = arith.constant 0 : index
    %c0_11 = arith.constant 0 : index
    %23 = vector.load %arg6[%c0_10, %c0_11] : memref<1x128xf32, #tpu.memory_space<vmem>>, vector<1x128xf32>
    %24 = vector.broadcast %23 : vector<1x128xf32> to vector<8x128xf32>
    %25 = arith.mulf %22, %24 : vector<8x128xf32>
    %cst_12 = arith.constant dense<0.000000e+00> : vector<8xf32>
    %26 = vector.multi_reduction <add>, %25, %cst_12 [1] : vector<8x128xf32> to vector<8xf32>
    %27 = vector.shape_cast %26 : vector<8xf32> to vector<8x1xf32>
    %c0_13 = arith.constant 0 : index
    %c0_14 = arith.constant 0 : index
    %28 = vector.load %arg7[%c0_13, %c0_14] : memref<1x1xf32, #tpu.memory_space<vmem>>, vector<1x1xf32>
    %29 = vector.broadcast %28 : vector<1x1xf32> to vector<8x1xf32>
    %30 = arith.addf %27, %29 : vector<8x1xf32>
    %31 = math.tanh %30 : vector<8x1xf32>
    %c0_15 = arith.constant 0 : index
    %c0_16 = arith.constant 0 : index
    %32 = vector.load %arg8[%c0_15, %c0_16] : memref<8x1xf32, #tpu.memory_space<vmem>>, vector<8x1xf32>
    tpu.vector_store %arg8[%c0_15, %c0_16], %31 {strides = array<i32>} : memref<8x1xf32, #tpu.memory_space<vmem>>, vector<8x1xf32>,
    return
  }
  func.func @transform_0(%arg0: i32) -> (i32, i32) {
    %c0_i32 = arith.constant 0 : i32
    %c0_i32_0 = arith.constant 0 : i32
    return %arg0, %c0_i32 : i32, i32
  }
  func.func @transform_1(%arg0: i32) -> (i32, i32) {
    %c0_i32 = arith.constant 0 : i32
    %c0_i32_0 = arith.constant 0 : i32
    %c0_i32_1 = arith.constant 0 : i32
    return %c0_i32, %c0_i32_0 : i32, i32
  }
  func.func @transform_2(%arg0: i32) -> (i32, i32) {
    %c0_i32 = arith.constant 0 : i32
    %c0_i32_0 = arith.constant 0 : i32
    %c0_i32_1 = arith.constant 0 : i32
    return %c0_i32, %c0_i32_0 : i32, i32
  }
  func.func @transform_3(%arg0: i32) -> (i32, i32) {
    %c0_i32 = arith.constant 0 : i32
    %c0_i32_0 = arith.constant 0 : i32
    %c0_i32_1 = arith.constant 0 : i32
    return %c0_i32, %c0_i32_0 : i32, i32
  }
  func.func @transform_4(%arg0: i32) -> (i32, i32) {
    %c0_i32 = arith.constant 0 : i32
    %c0_i32_0 = arith.constant 0 : i32
    %c0_i32_1 = arith.constant 0 : i32
    return %c0_i32, %c0_i32_0 : i32, i32
  }
  func.func @transform_5(%arg0: i32) -> (i32, i32) {
    %c0_i32 = arith.constant 0 : i32
    %c0_i32_0 = arith.constant 0 : i32
    %c0_i32_1 = arith.constant 0 : i32
    return %c0_i32, %c0_i32_0 : i32, i32
  }
  func.func @transform_6(%arg0: i32) -> (i32, i32) {
    %c0_i32 = arith.constant 0 : i32
    %c0_i32_0 = arith.constant 0 : i32
    %c0_i32_1 = arith.constant 0 : i32
    return %c0_i32, %c0_i32_0 : i32, i32
  }
  func.func @transform_7(%arg0: i32) -> (i32, i32) {
    %c0_i32 = arith.constant 0 : i32
    %c0_i32_0 = arith.constant 0 : i32
    return %arg0, %c0_i32 : i32, i32
  }
}

</mosaic_0001>

<llo_original>
// kernel: simple_dfa_forward.1
$region0: #{simple_dfa_forward.1}
  #allocation0 [shape = 'u32[]', space=smem, size = 0x4, offset = 0x4, fixed_abs, tag = 'smem constant byte address 0x4 - core index']
  #allocation1 [shape = 'u32[144,128]{1,0:T(1,128)}', space=vmem, size = 0x12000, scoped, tag = 'internal scratch']
  #allocation2 [shape = 'f32[1,1]{1,0:T(1,128)S(1)}', space=vmem, size = 0x200, scoped, tag = 'scoped memory for simple_dfa_forward.1']
  %s0 = inlined_call_operand.vmem [shape: f32[8,2], index: 0, kind: input, shape index: {}]
  %s1 = inlined_call_operand.vmem [shape: f32[8,128], index: 1, kind: input, shape index: {}]
  %s2 = inlined_call_operand.vmem [shape: f32[1,128], index: 2, kind: input, shape index: {}]
  %s3 = inlined_call_operand.hbm [shape: bf16[128,128], index: 3, kind: input, shape index: {}]
  %s4 = inlined_call_operand.vmem [shape: f32[1,128], index: 4, kind: input, shape index: {}]
  %s5 = inlined_call_operand.vmem [shape: f32[1,128], index: 5, kind: input, shape index: {}]
  %s6 = inlined_call_operand.<no memory space> [shape: f32[1,1], index: 6, kind: input, shape index: {}]
  %s7 = inlined_call_operand.vmem [shape: f32[8,1], index: 7, kind: output, shape index: {}]
  %s8 = sld [smem:[#allocation0]]
  $region42: #{simple_dfa_forward.1} parent=0
    _
  %s10 = ssub.s32 1, %s8
  %s11 = scalar_select 0, %s10, %s8
  %v12 = vstv %s6
  %13 = vst [vmem:[#allocation2] sm:$0x1] %v12
  $region1: #{simple_dfa_forward.1} parent=0
    #allocation3 [shape = 'u8[32768]{0}', space=vmem, size = 0x8000, scoped, tag = 'input window, operand 3, single buffered']
    #allocation4 [shape = 's32[1]{0}', space=sflag, size = 0x4, scoped, tag = 'scoped memory for simple_dfa_forward.1']
    %14 = vsyncpa [#allocation4], 0
    // Predicated region
    $region2: #{simple_dfa_forward.1} parent=1 // pred_check
      _
    $region3: #{simple_dfa_forward.1} parent=1 // pred_check_branch
      %16 = sbr.rel (0) target = $region5
    $region4: #{simple_dfa_forward.1} parent=1 // pred_region
      _
    $region5: #{simple_dfa_forward.1} parent=1 // pred_fallthru
      _
    // Predicated region
    $region6: #{simple_dfa_forward.1} parent=1 // pred_check
      _
    $region7: #{simple_dfa_forward.1} parent=1 // pred_check_branch
      %18 = sbr.rel (0) target = $region9
    $region8: #{simple_dfa_forward.1} parent=1 // pred_region
      _
    $region9: #{simple_dfa_forward.1} parent=1 // pred_fallthru
      _
    // Predicated region
    $region10: #{simple_dfa_forward.1} parent=1 // pred_check
      _
    $region11: #{simple_dfa_forward.1} parent=1 // pred_check_branch
      %20 = sbr.rel (0) target = $region13
    $region12: #{simple_dfa_forward.1} parent=1 // pred_region
      _
    $region13: #{simple_dfa_forward.1} parent=1 // pred_fallthru
      _
    // Predicated region
    $region14: #{simple_dfa_forward.1} parent=1 // pred_check
      _
    $region15: #{simple_dfa_forward.1} parent=1 // pred_check_branch
      %22 = sbr.rel (0) target = $region17
    $region16: #{simple_dfa_forward.1} parent=1 // pred_region
      %s24 = ssub.s32 1024, 1024
      %25 = vsyncadd [#allocation4], %s24
      %s26 = sshll.u32 [#allocation3], 4
      %s27 = int_to_ptr.vmem [resolvable:$true] %s26
      %32 = dma.hbm_to_vmem [thread:$0]  %s3, 1024, %s27, [#allocation4], 64, 64, 4
    $region17: #{simple_dfa_forward.1} parent=1 // pred_fallthru
      _
    // Predicated region
    $region18: #{simple_dfa_forward.1} parent=1 // pred_check
      _
    $region19: #{simple_dfa_forward.1} parent=1 // pred_check_branch
      %34 = sbr.rel (0) target = $region21
    $region20: #{simple_dfa_forward.1} parent=1 // pred_region
      _
    $region21: #{simple_dfa_forward.1} parent=1 // pred_fallthru
      _
    // Predicated region
    $region22: #{simple_dfa_forward.1} parent=1 // pred_check
      _
    $region23: #{simple_dfa_forward.1} parent=1 // pred_check_branch
      %36 = sbr.rel (0) target = $region25
    $region24: #{simple_dfa_forward.1} parent=1 // pred_region
      _
    $region25: #{simple_dfa_forward.1} parent=1 // pred_fallthru
      _
    // Predicated region
    $region26: #{simple_dfa_forward.1} parent=1 // pred_check
      _
    $region27: #{simple_dfa_forward.1} parent=1 // pred_check_branch
      %38 = sbr.rel (0) target = $region29
    $region28: #{simple_dfa_forward.1} parent=1 // pred_region
      _
    $region29: #{simple_dfa_forward.1} parent=1 // pred_fallthru
      _
    // Predicated region
    $region30: #{simple_dfa_forward.1} parent=1 // pred_check
      _
    $region31: #{simple_dfa_forward.1} parent=1 // pred_check_branch
      %40 = sbr.rel (0) target = $region33
    $region32: #{simple_dfa_forward.1} parent=1 // pred_region
      %41 = dma.done [#allocation4], 1024
    $region33: #{simple_dfa_forward.1} parent=1 // pred_fallthru
      _
    %v43 = vld [vmem:[%s0] sm:$0xff]
    %v44 = vld [vmem:[%s1] sm:$0x1]
    %46 = vset.pattern.permute.xlu0 0
    %47 = vperm.xlu0 %46, %v43
    %v48 = vpop.permute.xlu0 %47
    %v50 = vlaneseq
    %v51 = vshrl.u32 %v50, 7
    %v52 = vsub.s32 0, %v51
    %v53 = vrot.slane %v44, %v52
    %v54 = vmul.f32 %v48, %v53
    %v55 = vld [vmem:[%s1 + $0x1] sm:$0x1]
    %56 = vset.pattern.permute.xlu0 1
    %57 = vperm.xlu0 %56, %v43
    %v58 = vpop.permute.xlu0 %57
    %v60 = vlaneseq
    %v61 = vshrl.u32 %v60, 7
    %v62 = vsub.s32 0, %v61
    %v63 = vrot.slane %v55, %v62
    %v64 = vmul.f32 %v58, %v63
    %v65 = vadd.f32 %v54, %v64
    %v66 = vld [vmem:[%s2] sm:$0x1]
    %v68 = vlaneseq
    %v69 = vshrl.u32 %v68, 7
    %v70 = vsub.s32 0, %v69
    %v71 = vrot.slane %v66, %v70
    %v73 = vadd.f32 %v65, %v71
    %v74 = vtanh.pop %v73
    %v75 = vpack.c.bf16 %v74, %v74
    %v76 = vld [vmem:[#allocation3] sm:$0xf]
    %v77 = vld [vmem:[#allocation3 + $0x4] sm:$0xf]
    %v78 = vld [vmem:[#allocation3 + $0x8] sm:$0xf]
    %v79 = vld [vmem:[#allocation3 + $0xc] sm:$0xf]
    %v80 = vld [vmem:[#allocation3 + $0x10] sm:$0xf]
    %v81 = vld [vmem:[#allocation3 + $0x14] sm:$0xf]
    %v82 = vld [vmem:[#allocation3 + $0x18] sm:$0xf]
    %v83 = vld [vmem:[#allocation3 + $0x1c] sm:$0xf]
    %v84 = vld [vmem:[#allocation3 + $0x20] sm:$0xf]
    %v85 = vld [vmem:[#allocation3 + $0x24] sm:$0xf]
    %v86 = vld [vmem:[#allocation3 + $0x28] sm:$0xf]
    %v87 = vld [vmem:[#allocation3 + $0x2c] sm:$0xf]
    %v88 = vld [vmem:[#allocation3 + $0x30] sm:$0xf]
    %v89 = vld [vmem:[#allocation3 + $0x34] sm:$0xf]
    %v90 = vld [vmem:[#allocation3 + $0x38] sm:$0xf]
    %v91 = vld [vmem:[#allocation3 + $0x3c] sm:$0xf]
    %v92 = vld [vmem:[%s4] sm:$0x1]
    %v94 = vlaneseq
    %v95 = vshrl.u32 %v94, 7
    %v96 = vsub.s32 0, %v95
    %v97 = vrot.slane %v92, %v96
    %v115 = vunpack.c.l.b16 %v76
    %v116 = vunpack.c.l.b16 %v77
    %v117 = vunpack.c.l.b16 %v78
    %v118 = vunpack.c.l.b16 %v79
    %v119 = vunpack.c.l.b16 %v80
    %v120 = vunpack.c.l.b16 %v81
    %v121 = vunpack.c.l.b16 %v82
    %v122 = vunpack.c.l.b16 %v83
    %v123 = vunpack.c.l.b16 %v84
    %v124 = vunpack.c.l.b16 %v85
    %v125 = vunpack.c.l.b16 %v86
    %v126 = vunpack.c.l.b16 %v87
    %v127 = vunpack.c.l.b16 %v88
    %v128 = vunpack.c.l.b16 %v89
    %v129 = vunpack.c.l.b16 %v90
    %v130 = vunpack.c.l.b16 %v91
    %v131 = vpack.c.b16 %v116, %v115
    %v132 = vpack.c.b16 %v118, %v117
    %v133 = vpack.c.b16 %v120, %v119
    %v134 = vpack.c.b16 %v122, %v121
    %v135 = vpack.c.b16 %v124, %v123
    %v136 = vpack.c.b16 %v126, %v125
    %v137 = vpack.c.b16 %v128, %v127
    %v138 = vpack.c.b16 %v130, %v129
    %147 = vmatprep.subr.bf16.mxu0 0
    %148 = vmatpush1.bf16.msra.mxu0 %v138
    %149 = vmatprep.subr.bf16.mxu0 0
    %150 = vmatpush1.bf16.msra.mxu0 %v137
    %151 = vmatprep.subr.bf16.mxu0 0
    %152 = vmatpush1.bf16.msra.mxu0 %v136
    %153 = vmatprep.subr.bf16.mxu0 0
    %154 = vmatpush1.bf16.msra.mxu0 %v135
    %155 = vmatprep.subr.bf16.mxu0 0
    %156 = vmatpush1.bf16.msra.mxu0 %v134
    %157 = vmatprep.subr.bf16.mxu0 0
    %158 = vmatpush1.bf16.msra.mxu0 %v133
    %159 = vmatprep.subr.bf16.mxu0 0
    %160 = vmatpush1.bf16.msra.mxu0 %v132
    %161 = vmatprep.subr.bf16.mxu0 0
    %162 = vmatpush1.bf16.msra.mxu0 %v131
    %163 = vmatprep.subr.bf16.mxu0 0
    %164 = vmatpush2.bf16.msra.mxu0 0
    %165 = vmatprep.subr.bf16.mxu0 0
    %166 = vmatpush2.bf16.msra.mxu0 0
    %167 = vmatprep.subr.bf16.mxu0 0
    %168 = vmatpush2.bf16.msra.mxu0 0
    %169 = vmatprep.subr.bf16.mxu0 0
    %170 = vmatpush2.bf16.msra.mxu0 0
    %171 = vmatprep.subr.bf16.mxu0 0
    %172 = vmatpush2.bf16.msra.mxu0 0
    %173 = vmatprep.subr.bf16.mxu0 0
    %174 = vmatpush2.bf16.msra.mxu0 0
    %175 = vmatprep.subr.bf16.mxu0 0
    %176 = vmatpush2.bf16.msra.mxu0 0
    %177 = vmatprep.subr.bf16.mxu0 0
    %178 = vmatpush2.bf16.msra.mxu0 0
    %179 = vmatprep.mubr.bf16.mxu0 0
    %180 = vmatmul.mubr.bf16.gmra.mxu0 %v75
    %v181 = vpop.f32.mrf.mxu0
    %v182 = vadd.f32 %v97, %v181
    %v183 = vpop.f32.mrf.mxu0
    %v184 = vpop.f32.mrf.mxu0
    %v185 = vpop.f32.mrf.mxu0
    %186 = vdwg.mxu0
    %v187 = vtanh.pop %v182
    %v188 = vld [vmem:[%s5] sm:$0x1]
    %v190 = vlaneseq
    %v191 = vshrl.u32 %v190, 7
    %v192 = vsub.s32 0, %v191
    %v193 = vrot.slane %v188, %v192
    %v195 = vmul.f32 %v187, %v193
    %196 = vadd.xlane.f32.xlu0 %v195
    %v197 = vpop.xlane.xlu0 %196
    %v198 = vld [vmem:[#allocation2] sm:$0x1]
    %v200 = vlaneseq
    %v201 = vshrl.u32 %v200, 7
    %v202 = vsub.s32 0, %v201
    %v203 = vrot.slane %v198, %v202
    %v205 = vadd.f32 %v197, %v203
    %v206 = vtanh.pop %v205
    %vm207 = vcmask 7168
    %208 = vst.msk [vmem:[%s7] sm:$0xff] %vm207, %v206
    // Predicated region
    $region34: #{simple_dfa_forward.1} parent=1 // pred_check
      _
    $region35: #{simple_dfa_forward.1} parent=1 // pred_check_branch
      %210 = sbr.rel (0) target = $region37
    $region36: #{simple_dfa_forward.1} parent=1 // pred_region
      _
    $region37: #{simple_dfa_forward.1} parent=1 // pred_fallthru
      _
    // Predicated region
    $region38: #{simple_dfa_forward.1} parent=1 // pred_check
      _
    $region39: #{simple_dfa_forward.1} parent=1 // pred_check_branch
      %212 = sbr.rel (0) target = $region41
    $region40: #{simple_dfa_forward.1} parent=1 // pred_region
      _
    $region41: #{simple_dfa_forward.1} parent=1 // pred_fallthru
      _
    %213 = vsyncpa [#allocation4], 1

</llo_original>
